<compile_context>
chip_gen: v7x
topology: tpu7x:2x2x1
jax: 0.10.0
libtpu: 0.0.40
codegen_flags: <defaults>
</compile_context>

<pallas_src>
import functools

import jax
import jax.numpy as jnp
from jax.experimental import pallas as pl
from jax.experimental.pallas import tpu as pltpu


# --------------------------------------------------------------------------
# Kernel
# --------------------------------------------------------------------------
def swiglu_kernel(x_ref, w_ref, b_ref, o_ref, *, tn):
    """One grid step: (tm, D) x tile @ (D, 2*tn) fused weight tile.

    The fused tile holds [Wg_tile | Wu_tile] along the lane axis, so a single
    MXU dot produces gate and up side by side; the epilogue slices at tn
    (a multiple of 128 at production sizes -> lane-aligned static slice).
    """
    x = x_ref[...]                                                  # (tm, D)
    z = jnp.dot(x, w_ref[...], preferred_element_type=jnp.float32)  # (tm, 2*tn)
    z = z + b_ref[...].astype(jnp.float32)                          # + (1, 2*tn)
    gate = z[:, :tn]
    up = z[:, tn:]
    # SiLU(gate) * up; sigmoid goes to the EUP, keeping the MXU the binding unit.
    o_ref[...] = (gate * jax.nn.sigmoid(gate) * up).astype(o_ref.dtype)


# --------------------------------------------------------------------------
# Tiling / VMEM defaults (per TPU generation)
# --------------------------------------------------------------------------
def _generation_defaults():
    """(tm, tn, vmem_limit_bytes) defaults per chip generation."""
    kind = ""
    try:
        kind = jax.devices()[0].device_kind.lower()
    except Exception:  # pragma: no cover - be robust if device query fails
        pass
    if "v5" in kind or "v6" in kind:
        # 128 MiB physical VMEM: bigger hidden tiles, raise the scoped limit.
        return 512, 1024, 100 * 1024 * 1024
    # v7x (64 MiB per TC) and unknown chips: leave headroom for Mosaic scratch.
    return 512, 512, 48 * 1024 * 1024


def _pick_tn(H, target):
    """Largest multiple of 128 that divides H and is <= target (else H)."""
    if H <= target:
        return H
    t = (target // 128) * 128
    while t >= 128:
        if H % t == 0:
            return t
        t -= 128
    return H  # H not a multiple of 128: keep the whole hidden axis in one tile


# --------------------------------------------------------------------------
# Wrappers
# --------------------------------------------------------------------------
def swiglu(x2d, wg, bg, wu, bu, *, tm=None, tn=None, vmem_limit_bytes=None):
    """x2d: (M, D); wg/wu: (D, H); bg/bu: (H,) or (1, H)  ->  (M, H)."""
    M, D = x2d.shape
    H = wg.shape[1]

    tm_def, tn_def, vmem_def = _generation_defaults()
    if tm is None:
        tm = min(M, tm_def)
    if tn is None:
        tn = _pick_tn(H, tn_def)
    if vmem_limit_bytes is None:
        vmem_limit_bytes = vmem_def
    assert H % tn == 0, f"tn={tn} must divide H={H} for the fused-weight layout"

    n_ht = H // tn

    # Fuse Wg/Wu (and biases) tile-interleaved along the hidden axis so that
    # fused columns [j*2tn : j*2tn+tn) == Wg tile j and [.. +tn : (j+1)*2tn)
    # == Wu tile j.  One weight DMA + one MXU dot per grid step.
    w_fused = jnp.concatenate(
        [wg.reshape(D, n_ht, tn), wu.reshape(D, n_ht, tn)], axis=2
    ).reshape(D, 2 * H)
    b_fused = jnp.concatenate(
        [bg.reshape(n_ht, tn), bu.reshape(n_ht, tn)], axis=1
    ).reshape(1, 2 * H)

    # Rows innermost (fastest-varying) => weight tile block index is constant
    # across the inner loop and is fetched from HBM only once per hidden tile.
    grid = (n_ht, pl.cdiv(M, tm))

    kernel = functools.partial(swiglu_kernel, tn=tn)
    return pl.pallas_call(
        kernel,
        out_shape=jax.ShapeDtypeStruct((M, H), x2d.dtype),
        grid_spec=pltpu.PrefetchScalarGridSpec(
            num_scalar_prefetch=0,
            grid=grid,
            in_specs=[
                pl.BlockSpec((tm, D), lambda j, i: (i, 0)),        # x row tile (streams)
                pl.BlockSpec((D, 2 * tn), lambda j, i: (0, j)),    # fused Wg|Wu tile (resident per j)
                pl.BlockSpec((1, 2 * tn), lambda j, i: (0, j)),    # fused bg|bu tile
            ],
            out_specs=pl.BlockSpec((tm, tn), lambda j, i: (i, j)),
        ),
        compiler_params=pltpu.CompilerParams(
            # Hidden axis parallel (megacore / 2-TC shard disjoint weight
            # halves); row axis arbitrary so cores never duplicate weights.
            dimension_semantics=("parallel", "arbitrary"),
            vmem_limit_bytes=vmem_limit_bytes,
        ),
    )(x2d, w_fused, b_fused)


def swiglu_forward(x, wg, bg, wu, bu, *, tm=None, tn=None, vmem_limit_bytes=None):
    """x: (..., model_dim) -> (..., 4*model_dim). bg/bu may be (H,) or (1, H)."""
    D = x.shape[-1]
    H = wg.shape[1]
    x2d = x.reshape(-1, D)
    out = swiglu(x2d, wg, bg.reshape(H), wu, bu.reshape(H),
                 tm=tm, tn=tn, vmem_limit_bytes=vmem_limit_bytes)
    return out.reshape(x.shape[:-1] + (H,))


def _reference(x2d, wg, bg, wu, bu):
    gate = x2d.astype(jnp.float32) @ wg.astype(jnp.float32) + bg.reshape(-1)
    up = x2d.astype(jnp.float32) @ wu.astype(jnp.float32) + bu.reshape(-1)
    return gate * (1.0 / (1.0 + jnp.exp(-gate))) * up


# --------------------------------------------------------------------------
# Demo / correctness checks
# --------------------------------------------------------------------------
if __name__ == "__main__":
    # --- small shapes matching the module spec (model_dim=32 -> hidden=128) ---
    batch, seq, model_dim = 2, 8, 32
    hidden = 4 * model_dim  # 128

    key = jax.random.PRNGKey(0)
    kx, kwg, kbg, kwu, kbu = jax.random.split(key, 5)

    x = jax.random.normal(kx, (batch, seq, model_dim), dtype=jnp.float32)

    # nn.Linear(model_dim, 4*model_dim): weight (4D, D), bias (4D,).
    # Stored pre-transposed as (D, 4D) for the kernel.
    bound = 1.0 / float(model_dim) ** 0.5
    wg = jax.random.uniform(kwg, (model_dim, hidden), jnp.float32, -bound, bound)
    bg = jax.random.uniform(kbg, (hidden,), jnp.float32, -bound, bound)
    wu = jax.random.uniform(kwu, (model_dim, hidden), jnp.float32, -bound, bound)
    bu = jax.random.uniform(kbu, (hidden,), jnp.float32, -bound, bound)

    out = jax.block_until_ready(swiglu_forward(x, wg, bg, wu, bu))
    ref = _reference(x.reshape(-1, model_dim), wg, bg, wu, bu).reshape(out.shape)
    assert out.shape == (batch, seq, hidden)
    assert jnp.allclose(out, ref, atol=1e-4, rtol=1e-4), "f32 mismatch vs reference"

    # --- larger shape: exercise the (hidden outer, rows inner) tiled grid ---
    M2, D2 = 512, 128
    H2 = 4 * D2
    k2 = jax.random.split(jax.random.PRNGKey(1), 5)
    x2 = jax.random.normal(k2[0], (M2, D2), jnp.float32)
    b2 = 1.0 / float(D2) ** 0.5
    wg2 = jax.random.uniform(k2[1], (D2, H2), jnp.float32, -b2, b2)
    bg2 = jax.random.uniform(k2[2], (H2,), jnp.float32, -b2, b2)
    wu2 = jax.random.uniform(k2[3], (D2, H2), jnp.float32, -b2, b2)
    bu2 = jax.random.uniform(k2[4], (H2,), jnp.float32, -b2, b2)
    out2 = jax.block_until_ready(
        swiglu(x2, wg2, bg2, wu2, bu2, tm=128, tn=256))
    ref2 = _reference(x2, wg2, bg2, wu2, bu2)
    assert jnp.allclose(out2, ref2, atol=2e-3, rtol=2e-3), "tiled-grid mismatch"

    # --- bf16 compute path (MXU-native on all generations; f32 epilogue) ---
    out_bf16 = jax.block_until_ready(
        swiglu_forward(x.astype(jnp.bfloat16), wg.astype(jnp.bfloat16),
                       bg.astype(jnp.bfloat16), wu.astype(jnp.bfloat16),
                       bu.astype(jnp.bfloat16)))
    assert jnp.allclose(out_bf16.astype(jnp.float32), ref, atol=5e-2, rtol=5e-2), \
        "bf16 mismatch vs f32 reference"

    print("KERNEL_OK")
</pallas_src>

<mosaic_0001>
module attributes {stable_mosaic.version = 11 : i64} {
  func.func @swiglu_kernel(%arg0: i32, %arg1: i32, %arg2: memref<16x32xf32, #tpu.memory_space<vmem>>, %arg3: memref<32x256xf32, #tpu.memory_space<vmem>>, %arg4: memref<1x256xf32, #tpu.memory_space<vmem>>, %arg5: memref<16x128xf32, #tpu.memory_space<vmem>>) attributes {dimension_semantics = [#tpu.dimension_semantics<parallel>, #tpu.dimension_semantics<arbitrary>], iteration_bounds = array<i64: 1, 1>, scalar_prefetch = 0 : i64, scratch_operands = 0 : i64, tpu.core_type = #tpu.core_type<tc>, window_params = [{transform_indices = @transform_0, window_bounds = array<i64: 16, 32>}, {transform_indices = @transform_1, window_bounds = array<i64: 32, 256>}, {transform_indices = @transform_2, window_bounds = array<i64: 1, 256>}, {transform_indices = @transform_3, window_bounds = array<i64: 16, 128>}]} {
    %c0 = arith.constant 0 : index
    %c0_0 = arith.constant 0 : index
    %0 = vector.load %arg2[%c0, %c0_0] : memref<16x32xf32, #tpu.memory_space<vmem>>, vector<16x32xf32>
    %c0_1 = arith.constant 0 : index
    %c0_2 = arith.constant 0 : index
    %1 = vector.load %arg3[%c0_1, %c0_2] : memref<32x256xf32, #tpu.memory_space<vmem>>, vector<32x256xf32>
    %cst = arith.constant dense<0.000000e+00> : vector<16x256xf32>
    %2 = tpu.matmul %0, %1, %cst {dimension_numbers = #tpu.dot_dimension_numbers<[1], [0], [0], [1], [0, 0, 1, 1], [], []>} : vector<16x32xf32>, vector<32x256xf32>, vector<16x256xf32> -> vector<16x256xf32>
    %c0_3 = arith.constant 0 : index
    %c0_4 = arith.constant 0 : index
    %3 = vector.load %arg4[%c0_3, %c0_4] : memref<1x256xf32, #tpu.memory_space<vmem>>, vector<1x256xf32>
    %4 = vector.broadcast %3 : vector<1x256xf32> to vector<16x256xf32>
    %5 = arith.addf %2, %4 : vector<16x256xf32>
    %6 = vector.extract_strided_slice %5 {offsets = [0, 0], sizes = [16, 128], strides = [1, 1]} : vector<16x256xf32> to vector<16x128xf32>
    %7 = vector.extract_strided_slice %5 {offsets = [0, 128], sizes = [16, 128], strides = [1, 1]} : vector<16x256xf32> to vector<16x128xf32>
    %8 = arith.negf %6 : vector<16x128xf32>
    %9 = math.exp %8 : vector<16x128xf32>
    %cst_5 = arith.constant 1.000000e+00 : f32
    %10 = vector.broadcast %cst_5 : f32 to vector<16x128xf32>
    %11 = arith.addf %10, %9 : vector<16x128xf32>
    %12 = arith.divf %10, %11 : vector<16x128xf32>
    %13 = arith.mulf %6, %12 : vector<16x128xf32>
    %14 = arith.mulf %13, %7 : vector<16x128xf32>
    %c0_6 = arith.constant 0 : index
    %c0_7 = arith.constant 0 : index
    %15 = vector.load %arg5[%c0_6, %c0_7] : memref<16x128xf32, #tpu.memory_space<vmem>>, vector<16x128xf32>
    tpu.vector_store %arg5[%c0_6, %c0_7], %14 {strides = array<i32>} : memref<16x128xf32, #tpu.memory_space<vmem>>, vector<16x128xf32>,
    return
  }
  func.func @transform_0(%arg0: i32, %arg1: i32) -> (i32, i32) {
    %c0_i32 = arith.constant 0 : i32
    %c0_i32_0 = arith.constant 0 : i32
    return %arg1, %c0_i32 : i32, i32
  }
  func.func @transform_1(%arg0: i32, %arg1: i32) -> (i32, i32) {
    %c0_i32 = arith.constant 0 : i32
    %c0_i32_0 = arith.constant 0 : i32
    return %c0_i32, %arg0 : i32, i32
  }
  func.func @transform_2(%arg0: i32, %arg1: i32) -> (i32, i32) {
    %c0_i32 = arith.constant 0 : i32
    %c0_i32_0 = arith.constant 0 : i32
    return %c0_i32, %arg0 : i32, i32
  }
  func.func @transform_3(%arg0: i32, %arg1: i32) -> (i32, i32) {
    %c0_i32 = arith.constant 0 : i32
    return %arg1, %arg0 : i32, i32
  }
}

</mosaic_0001>

<llo_original>
// kernel: tpu_custom_call.1
$region0: #{tpu_custom_call.1}
  #allocation0 [shape = 'u32[]', space=smem, size = 0x4, offset = 0x4, fixed_abs, tag = 'smem constant byte address 0x4 - core index']
  #allocation1 [shape = 'u32[144,128]{1,0:T(1,128)}', space=vmem, size = 0x12000, scoped, tag = 'internal scratch']
  %s0 = inlined_call_operand.hbm [shape: f32[16,32], index: 0, kind: input, shape index: {}]
  %s1 = inlined_call_operand.hbm [shape: f32[32,256], index: 1, kind: input, shape index: {}]
  %s2 = inlined_call_operand.vmem [shape: f32[1,256], index: 2, kind: input, shape index: {}]
  %s3 = inlined_call_operand.hbm [shape: f32[16,128], index: 3, kind: output, shape index: {}]
  %s4 = sld [smem:[#allocation0]]
  $region30: #{tpu_custom_call.1} parent=0
    _
  %s6 = ssub.s32 1, %s4
  %s7 = scalar_select 0, %s6, %s4
  $region1: #{tpu_custom_call.1} parent=0
    #allocation2 [shape = 'u8[8192]{0}', space=vmem, size = 0x2000, scoped, tag = 'input window, operand 0, single buffered']
    #allocation3 [shape = 's32[1]{0}', space=sflag, size = 0x4, scoped, tag = 'scoped memory for tpu_custom_call.1']
    #allocation4 [shape = 's32[1]{0}', space=sflag, size = 0x4, scoped, tag = 'scoped memory for tpu_custom_call.1']
    #allocation5 [shape = 'u8[32768]{0}', space=vmem, size = 0x8000, scoped, tag = 'input window, operand 1, single buffered']
    #allocation6 [shape = 's32[1]{0}', space=sflag, size = 0x4, scoped, tag = 'scoped memory for tpu_custom_call.1']
    #allocation7 [shape = 'u8[8192]{0}', space=vmem, size = 0x2000, scoped, tag = 'output window, operand 0, single buffered']
    %8 = vsyncpa [#allocation3], 0
    %9 = vsyncpa [#allocation6], 0
    %10 = vsyncpa [#allocation4], 0
    // Predicated region
    $region2: #{tpu_custom_call.1} parent=1 // pred_check
      _
    $region3: #{tpu_custom_call.1} parent=1 // pred_check_branch
      %12 = sbr.rel (0) target = $region5
    $region4: #{tpu_custom_call.1} parent=1 // pred_region
      %s14 = ssub.s32 256, 256
      %15 = vsyncadd [#allocation3], %s14
      %s16 = sshll.u32 [#allocation2], 4
      %s17 = int_to_ptr.vmem [resolvable:$true] %s16
      %22 = dma.hbm_to_vmem [thread:$0]  %s0, 256, %s17, [#allocation3], 128, 128, 8
    $region5: #{tpu_custom_call.1} parent=1 // pred_fallthru
      _
    // Predicated region
    $region6: #{tpu_custom_call.1} parent=1 // pred_check
      _
    $region7: #{tpu_custom_call.1} parent=1 // pred_check_branch
      %24 = sbr.rel (0) target = $region9
    $region8: #{tpu_custom_call.1} parent=1 // pred_region
      %s26 = ssub.s32 1024, 1024
      %27 = vsyncadd [#allocation6], %s26
      %s28 = sshll.u32 [#allocation5], 4
      %s29 = int_to_ptr.vmem [resolvable:$true] %s28
      %34 = dma.hbm_to_vmem [thread:$0]  %s1, 1024, %s29, [#allocation6], 256, 256, 16
    $region9: #{tpu_custom_call.1} parent=1 // pred_fallthru
      _
    // Predicated region
    $region10: #{tpu_custom_call.1} parent=1 // pred_check
      _
    $region11: #{tpu_custom_call.1} parent=1 // pred_check_branch
      %36 = sbr.rel (0) target = $region13
    $region12: #{tpu_custom_call.1} parent=1 // pred_region
      _
    $region13: #{tpu_custom_call.1} parent=1 // pred_fallthru
      _
    // Predicated region
    $region14: #{tpu_custom_call.1} parent=1 // pred_check
      _
    $region15: #{tpu_custom_call.1} parent=1 // pred_check_branch
      %38 = sbr.rel (0) target = $region17
    $region16: #{tpu_custom_call.1} parent=1 // pred_region
      %39 = dma.done [#allocation3], 256
    $region17: #{tpu_custom_call.1} parent=1 // pred_fallthru
      _
    // Predicated region
    $region18: #{tpu_custom_call.1} parent=1 // pred_check
      _
    $region19: #{tpu_custom_call.1} parent=1 // pred_check_branch
      %41 = sbr.rel (0) target = $region21
    $region20: #{tpu_custom_call.1} parent=1 // pred_region
      %42 = dma.done [#allocation6], 1024
    $region21: #{tpu_custom_call.1} parent=1 // pred_fallthru
      _
    %v43 = vld [vmem:[#allocation2] sm:$0xff]
    %v44 = vld [vmem:[#allocation2 + $0x8] sm:$0xff]
    %v45 = vld [vmem:[#allocation5] sm:$0xff]
    %v46 = vld [vmem:[#allocation5 + $0x8] sm:$0xff]
    %v47 = vld [vmem:[#allocation5 + $0x10] sm:$0xff]
    %v48 = vld [vmem:[#allocation5 + $0x18] sm:$0xff]
    %v49 = vld [vmem:[#allocation5 + $0x20] sm:$0xff]
    %v50 = vld [vmem:[#allocation5 + $0x28] sm:$0xff]
    %v51 = vld [vmem:[#allocation5 + $0x30] sm:$0xff]
    %v52 = vld [vmem:[#allocation5 + $0x38] sm:$0xff]
    %v53 = vld [vmem:[%s2] sm:$0x3]
    %v55 = vlaneseq
    %v56 = vshrl.u32 %v55, 7
    %v57 = vsub.s32 0, %v56
    %v58 = vrot.slane %v53, %v57
    %v59 = vlaneseq
    %v60 = vshrl.u32 %v59, 7
    %v61 = vsub.s32 1, %v60
    %v62 = vrot.slane %v53, %v61
    %vm65 = vcmask 261120
    %v67 = vsel %vm65, %v43, 0
    %v70 = vsel %vm65, %v44, 0
    %72 = vmatprep.subr.mxu0 %v46
    %73 = vmatpush1.msra.mxu0 %v45
    %74 = vmatprep.subr.mxu0 %v48
    %75 = vmatpush1.msra.mxu0 %v47
    %76 = vmatprep.subr.mxu0 %v50
    %77 = vmatpush1.msra.mxu0 %v49
    %78 = vmatprep.subr.mxu0 %v52
    %79 = vmatpush1.msra.mxu0 %v51
    %80 = vmatprep.subr.mxu0 0.0
    %81 = vmatpush1.msra.mxu0 0.0
    %82 = vmatprep.subr.mxu0 0.0
    %83 = vmatpush1.msra.mxu0 0.0
    %84 = vmatprep.subr.mxu0 0.0
    %85 = vmatpush1.msra.mxu0 0.0
    %86 = vmatprep.subr.mxu0 0.0
    %87 = vmatpush1.msra.mxu0 0.0
    %88 = vmatprep.subr.mxu0 0.0
    %89 = vmatpush1.msra.mxu0 0.0
    %90 = vmatprep.subr.mxu0 0.0
    %91 = vmatpush1.msra.mxu0 0.0
    %92 = vmatprep.subr.mxu0 0.0
    %93 = vmatpush1.msra.mxu0 0.0
    %94 = vmatprep.subr.mxu0 0.0
    %95 = vmatpush1.msra.mxu0 0.0
    %96 = vmatprep.subr.mxu0 0.0
    %97 = vmatpush1.msra.mxu0 0.0
    %98 = vmatprep.subr.mxu0 0.0
    %99 = vmatpush1.msra.mxu0 0.0
    %100 = vmatprep.subr.mxu0 0.0
    %101 = vmatpush1.msra.mxu0 0.0
    %102 = vmatprep.subr.mxu0 0.0
    %103 = vmatpush1.msra.mxu0 0.0
    %104 = vmatprep.subr.mxu0 0.0
    %105 = vmatpush1.msra.mxu0 0.0
    %106 = vmatprep.subr.mxu0 0.0
    %107 = vmatpush1.msra.mxu0 0.0
    %108 = vmatprep.subr.mxu0 0.0
    %109 = vmatpush1.msra.mxu0 0.0
    %110 = vmatprep.subr.mxu0 0.0
    %111 = vmatpush1.msra.mxu0 0.0
    %112 = vmatprep.subr.mxu0 0.0
    %113 = vmatpush1.msra.mxu0 0.0
    %114 = vmatprep.subr.mxu0 0.0
    %115 = vmatpush1.msra.mxu0 0.0
    %116 = vmatprep.subr.mxu0 0.0
    %117 = vmatpush1.msra.mxu0 0.0
    %118 = vmatprep.subr.mxu0 0.0
    %119 = vmatpush1.msra.mxu0 0.0
    %120 = vmatprep.subr.mxu0 0.0
    %121 = vmatpush1.msra.mxu0 0.0
    %122 = vmatprep.subr.mxu0 0.0
    %123 = vmatpush1.msra.mxu0 0.0
    %124 = vmatprep.subr.mxu0 0.0
    %125 = vmatpush1.msra.mxu0 0.0
    %126 = vmatprep.subr.mxu0 0.0
    %127 = vmatpush1.msra.mxu0 0.0
    %128 = vmatprep.subr.mxu0 0.0
    %129 = vmatpush1.msra.mxu0 0.0
    %130 = vmatprep.subr.mxu0 0.0
    %131 = vmatpush1.msra.mxu0 0.0
    %132 = vmatprep.subr.mxu0 0.0
    %133 = vmatpush1.msra.mxu0 0.0
    %134 = vmatprep.subr.mxu0 0.0
    %135 = vmatpush1.msra.mxu0 0.0
    %136 = vmatprep.mubr.f32.mxu0 0.0
    %137 = vmatmul.mubr.f32.gmra.mrb[0].mxu0 %v67
    %v138 = vpop.f32.mrb[0].mxu0
    %v139 = vadd.f32 %v58, %v138
    %v140 = vpop.f32.mrb[0].mxu0
    %v141 = vadd.f32 %v62, %v140
    %142 = vmatprep.mubr.f32.mxu0 0.0
    %143 = vmatmul.mubr.f32.gmra.mrb[0].mxu0 %v70
    %v144 = vpop.f32.mrb[0].mxu0
    %v145 = vadd.f32 %v58, %v144
    %v146 = vpop.f32.mrb[0].mxu0
    %v147 = vadd.f32 %v62, %v146
    %148 = vdwg.mxu0
    %v149 = vxor.u32 %v139, 2147483648
    %v150 = vxor.u32 %v145, 2147483648
    %v151 = vmul.f32 %v149, 1.442695
    %v152 = vpow.pop %v151
    %v153 = vmul.f32 %v150, 1.442695
    %v154 = vpow.pop %v153
    %v155 = vadd.f32 %v152, 1.0
    %v156 = vadd.f32 %v154, 1.0
    %v157 = vrcp.pop %v155
    %v158 = vmul.f32 1.0, %v157
    %v159 = vrcp.pop %v156
    %v160 = vmul.f32 1.0, %v159
    %v161 = vmul.f32 %v139, %v158
    %v162 = vmul.f32 %v145, %v160
    %v163 = vmul.f32 %v161, %v141
    %v164 = vmul.f32 %v162, %v147
    %165 = vst [vmem:[#allocation7] sm:$0xff] %v163
    %166 = vst [vmem:[#allocation7 + $0x8] sm:$0xff] %v164
    // Predicated region
    $region22: #{tpu_custom_call.1} parent=1 // pred_check
      _
    $region23: #{tpu_custom_call.1} parent=1 // pred_check_branch
      %168 = sbr.rel (0) target = $region25
    $region24: #{tpu_custom_call.1} parent=1 // pred_region
      %s170 = ssub.s32 256, 256
      %171 = vsyncadd [#allocation4], %s170
      %s172 = sshll.u32 [#allocation7], 4
      %s173 = int_to_ptr.vmem [resolvable:$true] %s172
      %178 = dma.vmem_to_hbm [thread:$0]  %s173, 256, %s3, [#allocation4], 128, 128, 8
    $region25: #{tpu_custom_call.1} parent=1 // pred_fallthru
      _
    // Predicated region
    $region26: #{tpu_custom_call.1} parent=1 // pred_check
      _
    $region27: #{tpu_custom_call.1} parent=1 // pred_check_branch
      %180 = sbr.rel (0) target = $region29
    $region28: #{tpu_custom_call.1} parent=1 // pred_region
      %181 = dma.done [#allocation4], 256
    $region29: #{tpu_custom_call.1} parent=1 // pred_fallthru
      _
    %182 = vsyncpa [#allocation3], 1
    %183 = vsyncpa [#allocation6], 1
    %184 = vsyncpa [#allocation4], 1

</llo_original>
